<compile_context>
chip_gen: v5e
topology: v5e:2x2
jax: 0.10.0
libtpu: 0.0.40
codegen_flags: <defaults>
</compile_context>

<pallas_src>
import jax
import jax.numpy as jnp
import numpy as np
from jax.experimental import pallas as pl
from jax.experimental.pallas import tpu as pltpu


def _identity_copy_kernel(x_ref, o_ref):
    # FLOW.forward is `return x` -> straight VMEM copy of the current tile.
    o_ref[...] = x_ref[...]


_LANE = 128
# Per-tile byte budget. With double-buffered input + output this is ~4x in
# VMEM (<= ~32 MiB), which the derived vmem_limit_bytes below covers on every
# generation (v5e/v6e: 128 MiB physical; v7x: 64 MiB physical).
_TILE_BYTE_BUDGET = 8 * 1024 * 1024
_VMEM_CAP_BYTES = 48 * 1024 * 1024
_SPLIT_THRESHOLD_BYTES = 1 * 1024 * 1024  # force >=2 grid steps above this


def _flow_forward_pallas(x):
    """Tiled, lane-dense Pallas identity copy."""
    orig_shape = x.shape
    dtype = x.dtype
    itemsize = jnp.dtype(dtype).itemsize
    n = x.size

    if n % _LANE == 0 and n >= _LANE:
        # Lane-dense view: every row is exactly one full 128-lane stripe.
        rows = n // _LANE
        xv = x.reshape(rows, _LANE)
        row_bytes = _LANE * itemsize

        # Dtype-aware minimum sublane tile (f32->8, bf16->16, int8/fp8->32).
        min_sub = max(8, 32 // itemsize)

        tb = min(rows, max(1, _TILE_BYTE_BUDGET // row_bytes))
        tb = max(min_sub, (tb // min_sub) * min_sub)
        tb = min(tb, rows)

        # If the whole array would be one tile but is big enough to matter,
        # split it so both v7x TensorCores get work.
        if tb == rows and rows >= 2 * min_sub and n * itemsize >= _SPLIT_THRESHOLD_BYTES:
            half = (rows + 1) // 2
            tb = min(rows, max(min_sub, pl.cdiv(half, min_sub) * min_sub))

        grid = (pl.cdiv(rows, tb),)
        tile_bytes = tb * row_bytes
        # 2 double-buffers x 2 arrays x tile, +25% headroom, floor 16 MiB,
        # capped below v7x physical VMEM.
        vmem_limit = int(min(_VMEM_CAP_BYTES,
                             max(16 * 1024 * 1024, (4 * tile_bytes * 5) // 4)))

        out = pl.pallas_call(
            _identity_copy_kernel,
            out_shape=jax.ShapeDtypeStruct((rows, _LANE), dtype),
            grid=grid,
            in_specs=[pl.BlockSpec((tb, _LANE), lambda i: (i, 0))],
            out_specs=pl.BlockSpec((tb, _LANE), lambda i: (i, 0)),
            compiler_params=pltpu.CompilerParams(
                dimension_semantics=("parallel",),
                vmem_limit_bytes=vmem_limit,
            ),
        )(xv)
        return out.reshape(orig_shape)

    # Small / non-lane-aligned fallback (e.g. (2, 16)): one full-array block.
    ndim = len(orig_shape)
    return pl.pallas_call(
        _identity_copy_kernel,
        out_shape=jax.ShapeDtypeStruct(orig_shape, dtype),
        in_specs=[pl.BlockSpec(orig_shape, lambda: (0,) * ndim)],
        out_specs=pl.BlockSpec(orig_shape, lambda: (0,) * ndim),
    )(x)


def flow_forward(x, *, y_length=None, hidden_dim=None, z_dim=None,
                 use_pallas=False):
    """Pallas/JAX implementation of FLOW.forward (identity).

    hidden_dim / z_dim are accepted for API parity with the PyTorch module's
    __init__ but (as in the reference) do not affect the forward pass.

    Default path: return x unchanged (zero-cost identity -- the recommended
    production path). Set use_pallas=True to route through the tiled,
    lane-dense Pallas copy kernel.
    """
    if not use_pallas:
        return x
    return _flow_forward_pallas(x)


if __name__ == "__main__":
    # Module hyperparameters (forward pass only depends on x's shape).
    batch_size = 2
    y_length = 16
    hidden_dim = 32  # unused by forward (matches reference semantics)
    z_dim = 8        # unused by forward (matches reference semantics)

    key = jax.random.PRNGKey(0)
    x = jax.random.normal(key, (batch_size, y_length), dtype=jnp.float32)
    x_host = np.asarray(x)

    # Fast (no-kernel) identity path -- the recommended production path.
    out_fast = jax.block_until_ready(
        flow_forward(x, y_length=y_length, hidden_dim=hidden_dim, z_dim=z_dim))

    # Pallas path at the module's shape (small, non-lane-aligned fallback).
    out_pallas = jax.block_until_ready(
        flow_forward(x, y_length=y_length, hidden_dim=hidden_dim, z_dim=z_dim,
                     use_pallas=True))

    assert out_fast.shape == x_host.shape and out_fast.dtype == x.dtype
    assert out_pallas.shape == x_host.shape and out_pallas.dtype == x.dtype
    assert np.array_equal(np.asarray(out_fast), x_host)
    assert np.array_equal(np.asarray(out_pallas), x_host)

    # Also exercise the lane-dense tiled path (total elements % 128 == 0).
    key2 = jax.random.PRNGKey(0)
    x2 = jax.random.normal(key2, (64, 128), dtype=jnp.float32)
    x2_host = np.asarray(x2)
    out2 = jax.block_until_ready(flow_forward(x2, y_length=128, use_pallas=True))
    assert out2.shape == x2_host.shape and out2.dtype == x2.dtype
    assert np.array_equal(np.asarray(out2), x2_host)

    print("KERNEL_OK")
</pallas_src>

<mosaic_0001>
module attributes {stable_mosaic.version = 11 : i64} {
  func.func @_identity_copy_kernel(%arg0: memref<2x16xf32, #tpu.memory_space<vmem>>, %arg1: memref<2x16xf32, #tpu.memory_space<vmem>>) attributes {dimension_semantics = [], scalar_prefetch = 0 : i64, scratch_operands = 0 : i64, tpu.core_type = #tpu.core_type<tc>} {
    %c0 = arith.constant 0 : index
    %c0_0 = arith.constant 0 : index
    %0 = vector.load %arg0[%c0, %c0_0] : memref<2x16xf32, #tpu.memory_space<vmem>>, vector<2x16xf32>
    %c0_1 = arith.constant 0 : index
    %c0_2 = arith.constant 0 : index
    %1 = vector.load %arg1[%c0_1, %c0_2] : memref<2x16xf32, #tpu.memory_space<vmem>>, vector<2x16xf32>
    tpu.vector_store %arg1[%c0_1, %c0_2], %0 {strides = array<i32>} : memref<2x16xf32, #tpu.memory_space<vmem>>, vector<2x16xf32>,
    return
  }
}

</mosaic_0001>

<llo_original>
// kernel: tpu_custom_call.1
$region0: #{tpu_custom_call.1}
  #allocation0 [shape = 'u32[]', space=smem, size = 0x4, offset = 0x4, fixed_abs, tag = 'smem constant byte address 0x4 - core index']
  #allocation1 [shape = 'u32[72,128]{1,0:T(1,128)}', space=vmem, size = 0x9000, scoped, tag = 'internal scratch']
  %s0 = inlined_call_operand.hbm [shape: f32[2,16], index: 0, kind: input, shape index: {}]
  %s1 = inlined_call_operand.hbm [shape: f32[2,16], index: 1, kind: output, shape index: {}]
  %s2 = sld [smem:[#allocation0]]
  $region18: #{tpu_custom_call.1} parent=0
    _
  %s4 = ssub.s32 1, %s2
  %s5 = scalar_select 0, %s4, %s2
  $region1: #{tpu_custom_call.1} parent=0
    #allocation2 [shape = 'u8[1024]{0}', space=vmem, size = 0x400, scoped, tag = 'input window, operand 0, single buffered']
    #allocation3 [shape = 's32[1]{0}', space=sflag, size = 0x4, scoped, tag = 'scoped memory for tpu_custom_call.1']
    #allocation4 [shape = 's32[1]{0}', space=sflag, size = 0x4, scoped, tag = 'scoped memory for tpu_custom_call.1']
    #allocation5 [shape = 'u8[1024]{0}', space=vmem, size = 0x400, scoped, tag = 'output window, operand 0, single buffered']
    %6 = vsyncpa [#allocation3], 0
    %7 = vsyncpa [#allocation4], 0
    // Predicated region
    $region2: #{tpu_custom_call.1} parent=1 // pred_check
      _
    $region3: #{tpu_custom_call.1} parent=1 // pred_check_branch
      %9 = sbr.rel (0) target = $region5
    $region4: #{tpu_custom_call.1} parent=1 // pred_region
      %11 = vsyncadd [#allocation3], 0
      %s13 = sshll.u32 %s0, 4
      %s14 = int_to_ptr.hbm [resolvable:$true] %s13
      %s15 = sshll.u32 [#allocation2], 4
      %s16 = int_to_ptr.vmem [resolvable:$true] %s15
      %18 = dma.hbm_to_vmem [thread:$0]  %s14, 32, %s16, [#allocation3]
    $region5: #{tpu_custom_call.1} parent=1 // pred_fallthru
      _
    // Predicated region
    $region6: #{tpu_custom_call.1} parent=1 // pred_check
      _
    $region7: #{tpu_custom_call.1} parent=1 // pred_check_branch
      %20 = sbr.rel (0) target = $region9
    $region8: #{tpu_custom_call.1} parent=1 // pred_region
      %22 = dma.done [#allocation3], 32
    $region9: #{tpu_custom_call.1} parent=1 // pred_fallthru
      _
    %v23 = vld [vmem:[#allocation2] sm:$0x3]
    %vm24 = vcmask 123904
    %25 = vst.msk [vmem:[#allocation5] sm:$0x3] %vm24, %v23
    // Predicated region
    $region10: #{tpu_custom_call.1} parent=1 // pred_check
      _
    $region11: #{tpu_custom_call.1} parent=1 // pred_check_branch
      %27 = sbr.rel (0) target = $region13
    $region12: #{tpu_custom_call.1} parent=1 // pred_region
      %29 = vsyncadd [#allocation4], 0
      %s31 = sshll.u32 [#allocation5], 4
      %s32 = int_to_ptr.vmem [resolvable:$true] %s31
      %s33 = sshll.u32 %s1, 4
      %s34 = int_to_ptr.hbm [resolvable:$true] %s33
      %36 = dma.vmem_to_hbm [thread:$0]  %s32, 32, %s34, [#allocation4]
    $region13: #{tpu_custom_call.1} parent=1 // pred_fallthru
      _
    // Predicated region
    $region14: #{tpu_custom_call.1} parent=1 // pred_check
      _
    $region15: #{tpu_custom_call.1} parent=1 // pred_check_branch
      %38 = sbr.rel (0) target = $region17
    $region16: #{tpu_custom_call.1} parent=1 // pred_region
      %40 = dma.done [#allocation4], 32
    $region17: #{tpu_custom_call.1} parent=1 // pred_fallthru
      _
    %41 = vsyncpa [#allocation3], 1
    %42 = vsyncpa [#allocation4], 1

</llo_original>
